<compile_context>
chip_gen: v5e
topology: v5e:2x2
jax: 0.10.0
libtpu: 0.0.40
codegen_flags: <defaults>
</compile_context>

<pallas_src>
import jax
import jax.numpy as jnp
from jax.experimental import pallas as pl
from jax.experimental.pallas import tpu as pltpu

_LANE = 128
_SUBLANE = 8


def _round_up(n, m):
    return ((n + m - 1) // m) * m


# --------------------------------------------------------------------------- #
# Kernel
# --------------------------------------------------------------------------- #
def mlp_cls_kernel(x_ref, w1_ref, b1_ref, w2_ref, b2_ref, o_ref):
    # fc1: cast the x tile to bf16 in-kernel (cheap VPU cast; avoids a padded
    # bf16 copy of x in HBM) and run the MXU matmul with f32 accumulation.
    x = x_ref[...].astype(jnp.bfloat16)
    h = jnp.dot(x, w1_ref[...], preferred_element_type=jnp.float32)
    # Bias add + ReLU in f32 on the VPU (b1 is (1, H_pad) -> broadcasts).
    h = jnp.maximum(h + b1_ref[...], 0.0)
    # fc2: bf16 MXU matmul, f32 accumulation, then bias + sigmoid.
    z = jnp.dot(h.astype(jnp.bfloat16), w2_ref[...],
                preferred_element_type=jnp.float32)
    z = z + b2_ref[...]
    # Sigmoid lowers to the EUP slot; not on the critical path at these shapes.
    o_ref[...] = jax.nn.sigmoid(z).astype(o_ref.dtype)


# --------------------------------------------------------------------------- #
# One-time parameter preparation (hoisted out of the per-call path)
# --------------------------------------------------------------------------- #
def prepare_mlp_cls_params(w1, b1, w2, b2):
    """Pad/cast parameters once.

    Expects weights in (in_features, out_features) layout (transpose of
    torch.nn.Linear.weight). Output dims of W1/W2 and the biases are
    zero-padded to lane multiples of 128 so stores stay lane-dense; W1 keeps
    its K (=H) dim unpadded so x needs no feature padding. MXU operands are
    bf16, biases stay f32.
    """
    H = w1.shape[0]
    O = w2.shape[1]
    H_pad = _round_up(H, _LANE)
    O_pad = _round_up(O, _LANE)
    w1p = jnp.zeros((H, H_pad), jnp.bfloat16).at[:, :H].set(w1.astype(jnp.bfloat16))
    b1p = jnp.zeros((1, H_pad), jnp.float32).at[0, :H].set(b1.astype(jnp.float32))
    w2p = jnp.zeros((H_pad, O_pad), jnp.bfloat16).at[:H, :O].set(w2.astype(jnp.bfloat16))
    b2p = jnp.zeros((1, O_pad), jnp.float32).at[0, :O].set(b2.astype(jnp.float32))
    return {"w1": w1p, "b1": b1p, "w2": w2p, "b2": b2p,
            "H": H, "O": O, "H_pad": H_pad, "O_pad": O_pad}


# --------------------------------------------------------------------------- #
# Forward wrapper
# --------------------------------------------------------------------------- #
def _pick_batch_tile(B, tb_max):
    # x stays f32 in HBM -> a multiple of 8 keeps the sublane layout packed
    # (use 16 if x were ever passed as bf16).
    tb = min(tb_max, _round_up(B, _SUBLANE))
    # v7x has two TensorCores: if a large batch would land in a single tile,
    # split it in two so the second core has work (only once per-tile work
    # clearly exceeds the ~0.35us grid-step overhead; harmless on v5e/v6e).
    if tb >= B >= 512:
        tb = _round_up(-(-B // 2), 16)
    return tb


def _mlp_cls_call(x, params, *, tb_max, single_buffer_weights):
    B, H = x.shape
    assert H == params["H"], (H, params["H"])
    H_pad, O_pad, O = params["H_pad"], params["O_pad"], params["O"]

    tb = _pick_batch_tile(B, tb_max)
    B_pad = _round_up(B, tb)
    # Only the (rare) ragged-batch case pays a pad; never any feature padding.
    xp = x if B_pad == B else jnp.pad(x, ((0, B_pad - B), (0, 0)))

    # Constant-index_map operands never change block -> single buffer suffices
    # (halves resident weight VMEM; matters for large H on v7x's 64 MiB VMEM).
    const_kw = ({"pipeline_mode": pl.Buffered(1)} if single_buffer_weights else {})

    out = pl.pallas_call(
        mlp_cls_kernel,
        out_shape=jax.ShapeDtypeStruct((B_pad, O_pad), x.dtype),
        grid_spec=pl.GridSpec(
            grid=(B_pad // tb,),
            in_specs=[
                # x: one (tb, H) batch tile per grid step (double-buffered).
                pl.BlockSpec((tb, H), lambda i: (i, 0)),
                # Weights / biases: constant block index -> VMEM-resident.
                pl.BlockSpec((H, H_pad), lambda i: (0, 0), **const_kw),
                pl.BlockSpec((1, H_pad), lambda i: (0, 0), **const_kw),
                pl.BlockSpec((H_pad, O_pad), lambda i: (0, 0), **const_kw),
                pl.BlockSpec((1, O_pad), lambda i: (0, 0), **const_kw),
            ],
            out_specs=pl.BlockSpec((tb, O_pad), lambda i: (i, 0)),
        ),
        compiler_params=pltpu.CompilerParams(
            # Independent batch tiles -> megacore-parallel on v7x.
            dimension_semantics=("parallel",)),
        # NOTE: for very large H on v7x (64 MiB VMEM), switch W1 to a K-tiled
        # grid axis (reduction last, "arbitrary") with an f32 accumulator; on
        # v5e/v6e prefer raising vmem_limit_bytes and keeping weights resident.
    )(xp, params["w1"], params["b1"], params["w2"], params["b2"])

    out = out[:, :O]            # drop lane padding (output columns)
    if B_pad != B:
        out = out[:B]           # drop batch padding (ragged case only)
    return out


def mlp_cls(x, params, *, tb_max=512):
    """Forward pass of MLP_CLS: sigmoid(relu(x @ W1 + b1) @ W2 + b2)."""
    try:
        out = _mlp_cls_call(x, params, tb_max=tb_max, single_buffer_weights=True)
        jax.block_until_ready(out)
        return out
    except Exception:
        # Fallback if this Pallas build rejects pipeline_mode=pl.Buffered(1).
        return _mlp_cls_call(x, params, tb_max=tb_max, single_buffer_weights=False)


def reference(x, w1, b1, w2, b2):
    h = jnp.maximum(x @ w1 + b1, 0.0)
    return jax.nn.sigmoid(h @ w2 + b2)


if __name__ == "__main__":
    # Small shapes consistent with the module: HIDDEN_SIZE=32, OUTPUT_SIZE=8, batch=8.
    B, H, O = 8, 32, 8
    key = jax.random.PRNGKey(0)
    kx, k1, k2, k3, k4 = jax.random.split(key, 5)

    x = jax.random.normal(kx, (B, H), dtype=jnp.float32)
    # Deterministic init; weights in (in, out) layout (= torch fc.weight.T).
    w1 = jax.random.normal(k1, (H, H), dtype=jnp.float32) * 0.1
    b1 = jax.random.normal(k2, (H,), dtype=jnp.float32) * 0.1
    w2 = jax.random.normal(k3, (H, O), dtype=jnp.float32) * 0.1
    b2 = jax.random.normal(k4, (O,), dtype=jnp.float32) * 0.1

    # One-time parameter prep (padding / bf16 casts hoisted out of the call).
    params = prepare_mlp_cls_params(w1, b1, w2, b2)

    out = mlp_cls(x, params)
    jax.block_until_ready(out)

    ref = reference(x, w1, b1, w2, b2)
    assert out.shape == (B, O), out.shape
    assert out.dtype == x.dtype, out.dtype
    # bf16 MXU operands with f32 accumulation -> tolerance widened vs pure f32.
    assert jnp.allclose(out, ref, atol=2e-2, rtol=2e-2), (
        f"max abs err {jnp.max(jnp.abs(out - ref))}")

    print("KERNEL_OK")
</pallas_src>

<mosaic_0001>
module attributes {stable_mosaic.version = 11 : i64} {
  func.func @mlp_cls_kernel(%arg0: i32, %arg1: memref<8x32xf32, #tpu.memory_space<vmem>>, %arg2: memref<32x128xbf16, #tpu.memory_space<vmem>>, %arg3: memref<1x128xf32, #tpu.memory_space<vmem>>, %arg4: memref<128x128xbf16, #tpu.memory_space<vmem>>, %arg5: memref<1x128xf32, #tpu.memory_space<vmem>>, %arg6: memref<8x128xf32, #tpu.memory_space<vmem>>) attributes {dimension_semantics = [#tpu.dimension_semantics<parallel>], iteration_bounds = array<i64: 1>, scalar_prefetch = 0 : i64, scratch_operands = 0 : i64, tpu.core_type = #tpu.core_type<tc>, window_params = [{transform_indices = @transform_0, window_bounds = array<i64: 8, 32>}, {pipeline_mode = #tpu.pipeline_mode<synchronous>, transform_indices = @transform_1, window_bounds = array<i64: 32, 128>}, {pipeline_mode = #tpu.pipeline_mode<synchronous>, transform_indices = @transform_2, window_bounds = array<i64: 1, 128>}, {pipeline_mode = #tpu.pipeline_mode<synchronous>, transform_indices = @transform_3, window_bounds = array<i64: 128, 128>}, {pipeline_mode = #tpu.pipeline_mode<synchronous>, transform_indices = @transform_4, window_bounds = array<i64: 1, 128>}, {transform_indices = @transform_5, window_bounds = array<i64: 8, 128>}]} {
    %c0 = arith.constant 0 : index
    %c0_0 = arith.constant 0 : index
    %0 = vector.load %arg1[%c0, %c0_0] : memref<8x32xf32, #tpu.memory_space<vmem>>, vector<8x32xf32>
    %1 = arith.truncf %0 : vector<8x32xf32> to vector<8x32xbf16>
    %c0_1 = arith.constant 0 : index
    %c0_2 = arith.constant 0 : index
    %2 = vector.load %arg2[%c0_1, %c0_2] : memref<32x128xbf16, #tpu.memory_space<vmem>>, vector<32x128xbf16>
    %cst = arith.constant dense<0.000000e+00> : vector<8x128xf32>
    %3 = tpu.matmul %1, %2, %cst {dimension_numbers = #tpu.dot_dimension_numbers<[1], [0], [0], [1], [0, 0, 1, 1], [], []>} : vector<8x32xbf16>, vector<32x128xbf16>, vector<8x128xf32> -> vector<8x128xf32>
    %c0_3 = arith.constant 0 : index
    %c0_4 = arith.constant 0 : index
    %4 = vector.load %arg3[%c0_3, %c0_4] : memref<1x128xf32, #tpu.memory_space<vmem>>, vector<1x128xf32>
    %5 = vector.broadcast %4 : vector<1x128xf32> to vector<8x128xf32>
    %6 = arith.addf %3, %5 : vector<8x128xf32>
    %cst_5 = arith.constant 0.000000e+00 : f32
    %7 = vector.broadcast %cst_5 : f32 to vector<8x128xf32>
    %8 = arith.maximumf %6, %7 : vector<8x128xf32>
    %9 = arith.truncf %8 : vector<8x128xf32> to vector<8x128xbf16>
    %c0_6 = arith.constant 0 : index
    %c0_7 = arith.constant 0 : index
    %10 = vector.load %arg4[%c0_6, %c0_7] : memref<128x128xbf16, #tpu.memory_space<vmem>>, vector<128x128xbf16>
    %cst_8 = arith.constant dense<0.000000e+00> : vector<8x128xf32>
    %11 = tpu.matmul %9, %10, %cst_8 {dimension_numbers = #tpu.dot_dimension_numbers<[1], [0], [0], [1], [0, 0, 1, 1], [], []>} : vector<8x128xbf16>, vector<128x128xbf16>, vector<8x128xf32> -> vector<8x128xf32>
    %c0_9 = arith.constant 0 : index
    %c0_10 = arith.constant 0 : index
    %12 = vector.load %arg5[%c0_9, %c0_10] : memref<1x128xf32, #tpu.memory_space<vmem>>, vector<1x128xf32>
    %13 = vector.broadcast %12 : vector<1x128xf32> to vector<8x128xf32>
    %14 = arith.addf %11, %13 : vector<8x128xf32>
    %15 = arith.negf %14 : vector<8x128xf32>
    %16 = math.exp %15 : vector<8x128xf32>
    %cst_11 = arith.constant 1.000000e+00 : f32
    %17 = vector.broadcast %cst_11 : f32 to vector<8x128xf32>
    %18 = arith.addf %17, %16 : vector<8x128xf32>
    %19 = arith.divf %17, %18 : vector<8x128xf32>
    %c0_12 = arith.constant 0 : index
    %c0_13 = arith.constant 0 : index
    %20 = vector.load %arg6[%c0_12, %c0_13] : memref<8x128xf32, #tpu.memory_space<vmem>>, vector<8x128xf32>
    tpu.vector_store %arg6[%c0_12, %c0_13], %19 {strides = array<i32>} : memref<8x128xf32, #tpu.memory_space<vmem>>, vector<8x128xf32>,
    return
  }
  func.func @transform_0(%arg0: i32) -> (i32, i32) {
    %c0_i32 = arith.constant 0 : i32
    %c0_i32_0 = arith.constant 0 : i32
    return %arg0, %c0_i32 : i32, i32
  }
  func.func @transform_1(%arg0: i32) -> (i32, i32) {
    %c0_i32 = arith.constant 0 : i32
    %c0_i32_0 = arith.constant 0 : i32
    %c0_i32_1 = arith.constant 0 : i32
    return %c0_i32, %c0_i32_0 : i32, i32
  }
  func.func @transform_2(%arg0: i32) -> (i32, i32) {
    %c0_i32 = arith.constant 0 : i32
    %c0_i32_0 = arith.constant 0 : i32
    %c0_i32_1 = arith.constant 0 : i32
    return %c0_i32, %c0_i32_0 : i32, i32
  }
  func.func @transform_3(%arg0: i32) -> (i32, i32) {
    %c0_i32 = arith.constant 0 : i32
    %c0_i32_0 = arith.constant 0 : i32
    %c0_i32_1 = arith.constant 0 : i32
    return %c0_i32, %c0_i32_0 : i32, i32
  }
  func.func @transform_4(%arg0: i32) -> (i32, i32) {
    %c0_i32 = arith.constant 0 : i32
    %c0_i32_0 = arith.constant 0 : i32
    %c0_i32_1 = arith.constant 0 : i32
    return %c0_i32, %c0_i32_0 : i32, i32
  }
  func.func @transform_5(%arg0: i32) -> (i32, i32) {
    %c0_i32 = arith.constant 0 : i32
    %c0_i32_0 = arith.constant 0 : i32
    return %arg0, %c0_i32 : i32, i32
  }
}

module attributes {stable_mosaic.version = 11 : i64} {
  func.func @mlp_cls_kernel(%arg0: i32, %arg1: memref<8x32xf32, #tpu.memory_space<vmem>>, %arg2: memref<32x128xbf16, #tpu.memory_space<vmem>>, %arg3: memref<1x128xf32, #tpu.memory_space<vmem>>, %arg4: memref<128x128xbf16, #tpu.memory_space<vmem>>, %arg5: memref<1x128xf32, #tpu.memory_space<vmem>>, %arg6: memref<8x128xf32, #tpu.memory_space<vmem>>) attributes {dimension_semantics = [#tpu.dimension_semantics<parallel>], iteration_bounds = array<i64: 1>, scalar_prefetch = 0 : i64, scratch_operands = 0 : i64, tpu.core_type = #tpu.core_type<tc>, window_params = [{transform_indices = @transform_0, window_bounds = array<i64: 8, 32>}, {pipeline_mode = #tpu.pipeline_mode<synchronous>, transform_indices = @transform_1, window_bounds = array<i64: 32, 128>}, {pipeline_mode = #tpu.pipeline_mode<synchronous>, transform_indices = @transform_2, window_bounds = array<i64: 1, 128>}, {pipeline_mode = #tpu.pipeline_mode<synchronous>, transform_indices = @transform_3, window_bounds = array<i64: 128, 128>}, {pipeline_mode = #tpu.pipeline_mode<synchronous>, transform_indices = @transform_4, window_bounds = array<i64: 1, 128>}, {transform_indices = @transform_5, window_bounds = array<i64: 8, 128>}]} {
    %c0 = arith.constant 0 : index
    %c0_0 = arith.constant 0 : index
    %0 = vector.load %arg1[%c0, %c0_0] : memref<8x32xf32, #tpu.memory_space<vmem>>, vector<8x32xf32>
    %1 = arith.truncf %0 : vector<8x32xf32> to vector<8x32xbf16>
    %c0_1 = arith.constant 0 : index
    %c0_2 = arith.constant 0 : index
    %2 = vector.load %arg2[%c0_1, %c0_2] : memref<32x128xbf16, #tpu.memory_space<vmem>>, vector<32x128xbf16>
    %cst = arith.constant dense<0.000000e+00> : vector<8x128xf32>
    %3 = tpu.matmul %1, %2, %cst {dimension_numbers = #tpu.dot_dimension_numbers<[1], [0], [0], [1], [0, 0, 1, 1], [], []>} : vector<8x32xbf16>, vector<32x128xbf16>, vector<8x128xf32> -> vector<8x128xf32>
    %c0_3 = arith.constant 0 : index
    %c0_4 = arith.constant 0 : index
    %4 = vector.load %arg3[%c0_3, %c0_4] : memref<1x128xf32, #tpu.memory_space<vmem>>, vector<1x128xf32>
    %5 = vector.broadcast %4 : vector<1x128xf32> to vector<8x128xf32>
    %6 = arith.addf %3, %5 : vector<8x128xf32>
    %cst_5 = arith.constant 0.000000e+00 : f32
    %7 = vector.broadcast %cst_5 : f32 to vector<8x128xf32>
    %8 = arith.maximumf %6, %7 : vector<8x128xf32>
    %9 = arith.truncf %8 : vector<8x128xf32> to vector<8x128xbf16>
    %c0_6 = arith.constant 0 : index
    %c0_7 = arith.constant 0 : index
    %10 = vector.load %arg4[%c0_6, %c0_7] : memref<128x128xbf16, #tpu.memory_space<vmem>>, vector<128x128xbf16>
    %cst_8 = arith.constant dense<0.000000e+00> : vector<8x128xf32>
    %11 = tpu.matmul %9, %10, %cst_8 {dimension_numbers = #tpu.dot_dimension_numbers<[1], [0], [0], [1], [0, 0, 1, 1], [], []>} : vector<8x128xbf16>, vector<128x128xbf16>, vector<8x128xf32> -> vector<8x128xf32>
    %c0_9 = arith.constant 0 : index
    %c0_10 = arith.constant 0 : index
    %12 = vector.load %arg5[%c0_9, %c0_10] : memref<1x128xf32, #tpu.memory_space<vmem>>, vector<1x128xf32>
    %13 = vector.broadcast %12 : vector<1x128xf32> to vector<8x128xf32>
    %14 = arith.addf %11, %13 : vector<8x128xf32>
    %15 = arith.negf %14 : vector<8x128xf32>
    %16 = math.exp %15 : vector<8x128xf32>
    %cst_11 = arith.constant 1.000000e+00 : f32
    %17 = vector.broadcast %cst_11 : f32 to vector<8x128xf32>
    %18 = arith.addf %17, %16 : vector<8x128xf32>
    %19 = arith.divf %17, %18 : vector<8x128xf32>
    %c0_12 = arith.constant 0 : index
    %c0_13 = arith.constant 0 : index
    %20 = vector.load %arg6[%c0_12, %c0_13] : memref<8x128xf32, #tpu.memory_space<vmem>>, vector<8x128xf32>
    tpu.vector_store %arg6[%c0_12, %c0_13], %19 {strides = array<i32>} : memref<8x128xf32, #tpu.memory_space<vmem>>, vector<8x128xf32>,
    return
  }
  func.func @transform_0(%arg0: i32) -> (i32, i32) {
    %c0_i32 = arith.constant 0 : i32
    %c0_i32_0 = arith.constant 0 : i32
    return %arg0, %c0_i32 : i32, i32
  }
  func.func @transform_1(%arg0: i32) -> (i32, i32) {
    %c0_i32 = arith.constant 0 : i32
    %c0_i32_0 = arith.constant 0 : i32
    %c0_i32_1 = arith.constant 0 : i32
    return %c0_i32, %c0_i32_0 : i32, i32
  }
  func.func @transform_2(%arg0: i32) -> (i32, i32) {
    %c0_i32 = arith.constant 0 : i32
    %c0_i32_0 = arith.constant 0 : i32
    %c0_i32_1 = arith.constant 0 : i32
    return %c0_i32, %c0_i32_0 : i32, i32
  }
  func.func @transform_3(%arg0: i32) -> (i32, i32) {
    %c0_i32 = arith.constant 0 : i32
    %c0_i32_0 = arith.constant 0 : i32
    %c0_i32_1 = arith.constant 0 : i32
    return %c0_i32, %c0_i32_0 : i32, i32
  }
  func.func @transform_4(%arg0: i32) -> (i32, i32) {
    %c0_i32 = arith.constant 0 : i32
    %c0_i32_0 = arith.constant 0 : i32
    %c0_i32_1 = arith.constant 0 : i32
    return %c0_i32, %c0_i32_0 : i32, i32
  }
  func.func @transform_5(%arg0: i32) -> (i32, i32) {
    %c0_i32 = arith.constant 0 : i32
    %c0_i32_0 = arith.constant 0 : i32
    return %arg0, %c0_i32 : i32, i32
  }
}

</mosaic_0001>

<llo_original>
// kernel: tpu_custom_call.1
$region0: #{tpu_custom_call.1}
  #allocation0 [shape = 'u32[]', space=smem, size = 0x4, offset = 0x4, fixed_abs, tag = 'smem constant byte address 0x4 - core index']
  #allocation1 [shape = 'u32[72,128]{1,0:T(1,128)}', space=vmem, size = 0x9000, scoped, tag = 'internal scratch']
  %s0 = inlined_call_operand.hbm [shape: f32[8,32], index: 0, kind: input, shape index: {}]
  %s1 = inlined_call_operand.hbm [shape: bf16[32,128], index: 1, kind: input, shape index: {}]
  %s2 = inlined_call_operand.vmem [shape: f32[1,128], index: 2, kind: input, shape index: {}]
  %s3 = inlined_call_operand.hbm [shape: bf16[128,128], index: 3, kind: input, shape index: {}]
  %s4 = inlined_call_operand.vmem [shape: f32[1,128], index: 4, kind: input, shape index: {}]
  %s5 = inlined_call_operand.hbm [shape: f32[8,128], index: 5, kind: output, shape index: {}]
  %s6 = sld [smem:[#allocation0]]
  $region42: #{tpu_custom_call.1} parent=0
    _
  %s8 = ssub.s32 1, %s6
  %s9 = scalar_select 0, %s8, %s6
  $region1: #{tpu_custom_call.1} parent=0
    #allocation2 [shape = 'u8[4096]{0}', space=vmem, size = 0x1000, scoped, tag = 'input window, operand 0, single buffered']
    #allocation3 [shape = 's32[1]{0}', space=sflag, size = 0x4, scoped, tag = 'scoped memory for tpu_custom_call.1']
    #allocation4 [shape = 's32[1]{0}', space=sflag, size = 0x4, scoped, tag = 'scoped memory for tpu_custom_call.1']
    #allocation5 [shape = 'u8[8192]{0}', space=vmem, size = 0x2000, scoped, tag = 'input window, operand 1, single buffered']
    #allocation6 [shape = 's32[1]{0}', space=sflag, size = 0x4, scoped, tag = 'scoped memory for tpu_custom_call.1']
    #allocation7 [shape = 'u8[32768]{0}', space=vmem, size = 0x8000, scoped, tag = 'input window, operand 3, single buffered']
    #allocation8 [shape = 'u8[4096]{0}', space=vmem, size = 0x1000, scoped, tag = 'output window, operand 0, single buffered']
    %10 = vsyncpa [#allocation3], 0
    %11 = vsyncpa [#allocation6], 0
    %12 = vsyncpa [#allocation4], 0
    // Predicated region
    $region2: #{tpu_custom_call.1} parent=1 // pred_check
      _
    $region3: #{tpu_custom_call.1} parent=1 // pred_check_branch
      %14 = sbr.rel (0) target = $region5
    $region4: #{tpu_custom_call.1} parent=1 // pred_region
      %16 = vsyncadd [#allocation3], 0
      %s18 = sshll.u32 %s0, 4
      %s19 = int_to_ptr.hbm [resolvable:$true] %s18
      %s20 = sshll.u32 [#allocation2], 4
      %s21 = int_to_ptr.vmem [resolvable:$true] %s20
      %23 = dma.hbm_to_vmem [thread:$0]  %s19, 128, %s21, [#allocation3]
    $region5: #{tpu_custom_call.1} parent=1 // pred_fallthru
      _
    // Predicated region
    $region6: #{tpu_custom_call.1} parent=1 // pred_check
      _
    $region7: #{tpu_custom_call.1} parent=1 // pred_check_branch
      %25 = sbr.rel (0) target = $region9
    $region8: #{tpu_custom_call.1} parent=1 // pred_region
      %27 = vsyncadd [#allocation6], 0
      %s28 = sshll.u32 %s1, 4
      %s29 = int_to_ptr.hbm [resolvable:$true] %s28
      %s30 = sshll.u32 [#allocation5], 4
      %s31 = int_to_ptr.vmem [resolvable:$true] %s30
      %36 = dma.hbm_to_vmem [thread:$0]  %s29, 256, %s31, [#allocation6], 64, 64, 4
    $region9: #{tpu_custom_call.1} parent=1 // pred_fallthru
      _
    // Predicated region
    $region10: #{tpu_custom_call.1} parent=1 // pred_check
      _
    $region11: #{tpu_custom_call.1} parent=1 // pred_check_branch
      %38 = sbr.rel (0) target = $region13
    $region12: #{tpu_custom_call.1} parent=1 // pred_region
      _
    $region13: #{tpu_custom_call.1} parent=1 // pred_fallthru
      _
    // Predicated region
    $region14: #{tpu_custom_call.1} parent=1 // pred_check
      _
    $region15: #{tpu_custom_call.1} parent=1 // pred_check_branch
      %40 = sbr.rel (0) target = $region17
    $region16: #{tpu_custom_call.1} parent=1 // pred_region
      %42 = vsyncadd [#allocation6], 0
      %s43 = sshll.u32 %s3, 4
      %s44 = int_to_ptr.hbm [resolvable:$true] %s43
      %s45 = sshll.u32 [#allocation7], 4
      %s46 = int_to_ptr.vmem [resolvable:$true] %s45
      %51 = dma.hbm_to_vmem [thread:$0]  %s44, 1024, %s46, [#allocation6], 64, 64, 4
    $region17: #{tpu_custom_call.1} parent=1 // pred_fallthru
      _
    // Predicated region
    $region18: #{tpu_custom_call.1} parent=1 // pred_check
      _
    $region19: #{tpu_custom_call.1} parent=1 // pred_check_branch
      %53 = sbr.rel (0) target = $region21
    $region20: #{tpu_custom_call.1} parent=1 // pred_region
      _
    $region21: #{tpu_custom_call.1} parent=1 // pred_fallthru
      _
    // Predicated region
    $region22: #{tpu_custom_call.1} parent=1 // pred_check
      _
    $region23: #{tpu_custom_call.1} parent=1 // pred_check_branch
      %55 = sbr.rel (0) target = $region25
    $region24: #{tpu_custom_call.1} parent=1 // pred_region
      %57 = dma.done [#allocation3], 128
    $region25: #{tpu_custom_call.1} parent=1 // pred_fallthru
      _
    // Predicated region
    $region26: #{tpu_custom_call.1} parent=1 // pred_check
      _
    $region27: #{tpu_custom_call.1} parent=1 // pred_check_branch
      %59 = sbr.rel (0) target = $region29
    $region28: #{tpu_custom_call.1} parent=1 // pred_region
      %61 = dma.done [#allocation6], 256
    $region29: #{tpu_custom_call.1} parent=1 // pred_fallthru
      _
    // Predicated region
    $region30: #{tpu_custom_call.1} parent=1 // pred_check
      _
    $region31: #{tpu_custom_call.1} parent=1 // pred_check_branch
      %63 = sbr.rel (0) target = $region33
    $region32: #{tpu_custom_call.1} parent=1 // pred_region
      %65 = dma.done [#allocation6], 1024
    $region33: #{tpu_custom_call.1} parent=1 // pred_fallthru
      _
    %v67 = vld [vmem:[#allocation2] sm:$0xff]
    %v68 = vpack.c.bf16 %v67, %v67
    %v69 = vld [vmem:[#allocation5] sm:$0xf]
    %v70 = vld [vmem:[#allocation5 + $0x4] sm:$0xf]
    %v71 = vld [vmem:[#allocation5 + $0x8] sm:$0xf]
    %v72 = vld [vmem:[#allocation5 + $0xc] sm:$0xf]
    %v73 = vld [vmem:[%s2] sm:$0x1]
    %v75 = vperm.slane %v73, 0
    %v81 = vunpack.c.l.b16 %v69
    %v82 = vunpack.c.l.b16 %v70
    %v83 = vunpack.c.l.b16 %v71
    %v84 = vunpack.c.l.b16 %v72
    %v85 = vpack.c.b16 %v82, %v81
    %v86 = vpack.c.b16 %v84, %v83
    %vm89 = vcmask 261120
    %v91 = vsel %vm89, %v68, 0
    %93 = vmatpush.bf16.msra.mxu0 0
    %94 = vmatpush.bf16.msra.mxu0 0
    %95 = vmatpush.bf16.msra.mxu0 0
    %96 = vmatpush.bf16.msra.mxu0 0
    %97 = vmatpush.bf16.msra.mxu0 0
    %98 = vmatpush.bf16.msra.mxu0 0
    %99 = vmatpush.bf16.msra.mxu0 %v86
    %100 = vmatpush.bf16.msra.mxu0 %v85
    %101 = vmatmul.bf16.gmra.mxu0 %v91
    %v102 = vpop.f32.mrf.mxu0
    %v103 = vadd.f32 %v75, %v102
    %v104 = vpop.f32.mrf.mxu0
    %105 = vdwg.mxu0
    %v106 = vmax.f32 %v103, 0.0
    %v107 = vpack.c.bf16 %v106, %v106
    %v108 = vld [vmem:[#allocation7] sm:$0xf]
    %v109 = vld [vmem:[#allocation7 + $0x4] sm:$0xf]
    %v110 = vld [vmem:[#allocation7 + $0x8] sm:$0xf]
    %v111 = vld [vmem:[#allocation7 + $0xc] sm:$0xf]
    %v112 = vld [vmem:[#allocation7 + $0x10] sm:$0xf]
    %v113 = vld [vmem:[#allocation7 + $0x14] sm:$0xf]
    %v114 = vld [vmem:[#allocation7 + $0x18] sm:$0xf]
    %v115 = vld [vmem:[#allocation7 + $0x1c] sm:$0xf]
    %v116 = vld [vmem:[#allocation7 + $0x20] sm:$0xf]
    %v117 = vld [vmem:[#allocation7 + $0x24] sm:$0xf]
    %v118 = vld [vmem:[#allocation7 + $0x28] sm:$0xf]
    %v119 = vld [vmem:[#allocation7 + $0x2c] sm:$0xf]
    %v120 = vld [vmem:[#allocation7 + $0x30] sm:$0xf]
    %v121 = vld [vmem:[#allocation7 + $0x34] sm:$0xf]
    %v122 = vld [vmem:[#allocation7 + $0x38] sm:$0xf]
    %v123 = vld [vmem:[#allocation7 + $0x3c] sm:$0xf]
    %v124 = vld [vmem:[%s4] sm:$0x1]
    %v126 = vperm.slane %v124, 0
    %v144 = vunpack.c.l.b16 %v108
    %v145 = vunpack.c.l.b16 %v109
    %v146 = vunpack.c.l.b16 %v110
    %v147 = vunpack.c.l.b16 %v111
    %v148 = vunpack.c.l.b16 %v112
    %v149 = vunpack.c.l.b16 %v113
    %v150 = vunpack.c.l.b16 %v114
    %v151 = vunpack.c.l.b16 %v115
    %v152 = vunpack.c.l.b16 %v116
    %v153 = vunpack.c.l.b16 %v117
    %v154 = vunpack.c.l.b16 %v118
    %v155 = vunpack.c.l.b16 %v119
    %v156 = vunpack.c.l.b16 %v120
    %v157 = vunpack.c.l.b16 %v121
    %v158 = vunpack.c.l.b16 %v122
    %v159 = vunpack.c.l.b16 %v123
    %v160 = vpack.c.b16 %v145, %v144
    %v161 = vpack.c.b16 %v147, %v146
    %v162 = vpack.c.b16 %v149, %v148
    %v163 = vpack.c.b16 %v151, %v150
    %v164 = vpack.c.b16 %v153, %v152
    %v165 = vpack.c.b16 %v155, %v154
    %v166 = vpack.c.b16 %v157, %v156
    %v167 = vpack.c.b16 %v159, %v158
    %176 = vmatpush.bf16.msra.mxu0 %v167
    %177 = vmatpush.bf16.msra.mxu0 %v166
    %178 = vmatpush.bf16.msra.mxu0 %v165
    %179 = vmatpush.bf16.msra.mxu0 %v164
    %180 = vmatpush.bf16.msra.mxu0 %v163
    %181 = vmatpush.bf16.msra.mxu0 %v162
    %182 = vmatpush.bf16.msra.mxu0 %v161
    %183 = vmatpush.bf16.msra.mxu0 %v160
    %184 = vmatmul.bf16.gmra.mxu0 %v107
    %v185 = vpop.f32.mrf.mxu0
    %v186 = vadd.f32 %v126, %v185
    %v187 = vpop.f32.mrf.mxu0
    %188 = vdwg.mxu0
    %v189 = vxor.u32 %v186, 2147483648
    %v190 = vmul.f32 %v189, 1.442695
    %v191 = vpow.pop %v190
    %v192 = vadd.f32 %v191, 1.0
    %v193 = vrcp.pop %v192
    %v194 = vmul.f32 %v192, %v193
    %v195 = vsub.f32 1.0, %v194
    %v196 = vmul.f32 %v193, %v195
    %v197 = vadd.f32 %v193, %v196
    %vm198 = vweird.f32 %v192
    %vm199 = vweird.f32 %v193
    %vm200 = vmor %vm198, %vm199
    %v201 = vsel %vm200, %v193, %v197
    %v202 = vand.u32 2147483647, %v192
    %vm203 = vcmp.eq.f32.partialorder %v202, 8.507059e+37
    %v204 = vand.u32 %v192, 2147483648
    %v205 = vor.u32 1.1754944e-38, %v204
    %v206 = vsel %vm203, %v205, %v201
    %v207 = vmul.f32 1.0, %v206
    %208 = vst [vmem:[#allocation8] sm:$0xff] %v207
    // Predicated region
    $region34: #{tpu_custom_call.1} parent=1 // pred_check
      _
    $region35: #{tpu_custom_call.1} parent=1 // pred_check_branch
      %210 = sbr.rel (0) target = $region37
    $region36: #{tpu_custom_call.1} parent=1 // pred_region
      %212 = vsyncadd [#allocation4], 0
      %s214 = sshll.u32 [#allocation8], 4
      %s215 = int_to_ptr.vmem [resolvable:$true] %s214
      %s216 = sshll.u32 %s5, 4
      %s217 = int_to_ptr.hbm [resolvable:$true] %s216
      %219 = dma.vmem_to_hbm [thread:$0]  %s215, 128, %s217, [#allocation4]
    $region37: #{tpu_custom_call.1} parent=1 // pred_fallthru
      _
    // Predicated region
    $region38: #{tpu_custom_call.1} parent=1 // pred_check
      _
    $region39: #{tpu_custom_call.1} parent=1 // pred_check_branch
      %221 = sbr.rel (0) target = $region41
    $region40: #{tpu_custom_call.1} parent=1 // pred_region
      %223 = dma.done [#allocation4], 128
    $region41: #{tpu_custom_call.1} parent=1 // pred_fallthru
      _
    %224 = vsyncpa [#allocation3], 1
    %225 = vsyncpa [#allocation6], 1
    %226 = vsyncpa [#allocation4], 1

// kernel: tpu_custom_call.1
$region0: #{tpu_custom_call.1}
  #allocation0 [shape = 'u32[]', space=smem, size = 0x4, offset = 0x4, fixed_abs, tag = 'smem constant byte address 0x4 - core index']
  #allocation1 [shape = 'u32[72,128]{1,0:T(1,128)}', space=vmem, size = 0x9000, scoped, tag = 'internal scratch']
  %s0 = inlined_call_operand.hbm [shape: f32[8,32], index: 0, kind: input, shape index: {}]
  %s1 = inlined_call_operand.hbm [shape: bf16[32,128], index: 1, kind: input, shape index: {}]
  %s2 = inlined_call_operand.vmem [shape: f32[1,128], index: 2, kind: input, shape index: {}]
  %s3 = inlined_call_operand.hbm [shape: bf16[128,128], index: 3, kind: input, shape index: {}]
  %s4 = inlined_call_operand.vmem [shape: f32[1,128], index: 4, kind: input, shape index: {}]
  %s5 = inlined_call_operand.hbm [shape: f32[8,128], index: 5, kind: output, shape index: {}]
  %s6 = sld [smem:[#allocation0]]
  $region42: #{tpu_custom_call.1} parent=0
    _
  %s8 = ssub.s32 1, %s6
  %s9 = scalar_select 0, %s8, %s6
  $region1: #{tpu_custom_call.1} parent=0
    #allocation2 [shape = 'u8[4096]{0}', space=vmem, size = 0x1000, scoped, tag = 'input window, operand 0, single buffered']
    #allocation3 [shape = 's32[1]{0}', space=sflag, size = 0x4, scoped, tag = 'scoped memory for tpu_custom_call.1']
    #allocation4 [shape = 's32[1]{0}', space=sflag, size = 0x4, scoped, tag = 'scoped memory for tpu_custom_call.1']
    #allocation5 [shape = 'u8[8192]{0}', space=vmem, size = 0x2000, scoped, tag = 'input window, operand 1, single buffered']
    #allocation6 [shape = 's32[1]{0}', space=sflag, size = 0x4, scoped, tag = 'scoped memory for tpu_custom_call.1']
    #allocation7 [shape = 'u8[32768]{0}', space=vmem, size = 0x8000, scoped, tag = 'input window, operand 3, single buffered']
    #allocation8 [shape = 'u8[4096]{0}', space=vmem, size = 0x1000, scoped, tag = 'output window, operand 0, single buffered']
    %10 = vsyncpa [#allocation3], 0
    %11 = vsyncpa [#allocation6], 0
    %12 = vsyncpa [#allocation4], 0
    // Predicated region
    $region2: #{tpu_custom_call.1} parent=1 // pred_check
      _
    $region3: #{tpu_custom_call.1} parent=1 // pred_check_branch
      %14 = sbr.rel (0) target = $region5
    $region4: #{tpu_custom_call.1} parent=1 // pred_region
      %16 = vsyncadd [#allocation3], 0
      %s18 = sshll.u32 %s0, 4
      %s19 = int_to_ptr.hbm [resolvable:$true] %s18
      %s20 = sshll.u32 [#allocation2], 4
      %s21 = int_to_ptr.vmem [resolvable:$true] %s20
      %23 = dma.hbm_to_vmem [thread:$0]  %s19, 128, %s21, [#allocation3]
    $region5: #{tpu_custom_call.1} parent=1 // pred_fallthru
      _
    // Predicated region
    $region6: #{tpu_custom_call.1} parent=1 // pred_check
      _
    $region7: #{tpu_custom_call.1} parent=1 // pred_check_branch
      %25 = sbr.rel (0) target = $region9
    $region8: #{tpu_custom_call.1} parent=1 // pred_region
      %27 = vsyncadd [#allocation6], 0
      %s28 = sshll.u32 %s1, 4
      %s29 = int_to_ptr.hbm [resolvable:$true] %s28
      %s30 = sshll.u32 [#allocation5], 4
      %s31 = int_to_ptr.vmem [resolvable:$true] %s30
      %36 = dma.hbm_to_vmem [thread:$0]  %s29, 256, %s31, [#allocation6], 64, 64, 4
    $region9: #{tpu_custom_call.1} parent=1 // pred_fallthru
      _
    // Predicated region
    $region10: #{tpu_custom_call.1} parent=1 // pred_check
      _
    $region11: #{tpu_custom_call.1} parent=1 // pred_check_branch
      %38 = sbr.rel (0) target = $region13
    $region12: #{tpu_custom_call.1} parent=1 // pred_region
      _
    $region13: #{tpu_custom_call.1} parent=1 // pred_fallthru
      _
    // Predicated region
    $region14: #{tpu_custom_call.1} parent=1 // pred_check
      _
    $region15: #{tpu_custom_call.1} parent=1 // pred_check_branch
      %40 = sbr.rel (0) target = $region17
    $region16: #{tpu_custom_call.1} parent=1 // pred_region
      %42 = vsyncadd [#allocation6], 0
      %s43 = sshll.u32 %s3, 4
      %s44 = int_to_ptr.hbm [resolvable:$true] %s43
      %s45 = sshll.u32 [#allocation7], 4
      %s46 = int_to_ptr.vmem [resolvable:$true] %s45
      %51 = dma.hbm_to_vmem [thread:$0]  %s44, 1024, %s46, [#allocation6], 64, 64, 4
    $region17: #{tpu_custom_call.1} parent=1 // pred_fallthru
      _
    // Predicated region
    $region18: #{tpu_custom_call.1} parent=1 // pred_check
      _
    $region19: #{tpu_custom_call.1} parent=1 // pred_check_branch
      %53 = sbr.rel (0) target = $region21
    $region20: #{tpu_custom_call.1} parent=1 // pred_region
      _
    $region21: #{tpu_custom_call.1} parent=1 // pred_fallthru
      _
    // Predicated region
    $region22: #{tpu_custom_call.1} parent=1 // pred_check
      _
    $region23: #{tpu_custom_call.1} parent=1 // pred_check_branch
      %55 = sbr.rel (0) target = $region25
    $region24: #{tpu_custom_call.1} parent=1 // pred_region
      %57 = dma.done [#allocation3], 128
    $region25: #{tpu_custom_call.1} parent=1 // pred_fallthru
      _
    // Predicated region
    $region26: #{tpu_custom_call.1} parent=1 // pred_check
      _
    $region27: #{tpu_custom_call.1} parent=1 // pred_check_branch
      %59 = sbr.rel (0) target = $region29
    $region28: #{tpu_custom_call.1} parent=1 // pred_region
      %61 = dma.done [#allocation6], 256
    $region29: #{tpu_custom_call.1} parent=1 // pred_fallthru
      _
    // Predicated region
    $region30: #{tpu_custom_call.1} parent=1 // pred_check
      _
    $region31: #{tpu_custom_call.1} parent=1 // pred_check_branch
      %63 = sbr.rel (0) target = $region33
    $region32: #{tpu_custom_call.1} parent=1 // pred_region
      %65 = dma.done [#allocation6], 1024
    $region33: #{tpu_custom_call.1} parent=1 // pred_fallthru
      _
    %v67 = vld [vmem:[#allocation2] sm:$0xff]
    %v68 = vpack.c.bf16 %v67, %v67
    %v69 = vld [vmem:[#allocation5] sm:$0xf]
    %v70 = vld [vmem:[#allocation5 + $0x4] sm:$0xf]
    %v71 = vld [vmem:[#allocation5 + $0x8] sm:$0xf]
    %v72 = vld [vmem:[#allocation5 + $0xc] sm:$0xf]
    %v73 = vld [vmem:[%s2] sm:$0x1]
    %v75 = vperm.slane %v73, 0
    %v81 = vunpack.c.l.b16 %v69
    %v82 = vunpack.c.l.b16 %v70
    %v83 = vunpack.c.l.b16 %v71
    %v84 = vunpack.c.l.b16 %v72
    %v85 = vpack.c.b16 %v82, %v81
    %v86 = vpack.c.b16 %v84, %v83
    %vm89 = vcmask 261120
    %v91 = vsel %vm89, %v68, 0
    %93 = vmatpush.bf16.msra.mxu0 0
    %94 = vmatpush.bf16.msra.mxu0 0
    %95 = vmatpush.bf16.msra.mxu0 0
    %96 = vmatpush.bf16.msra.mxu0 0
    %97 = vmatpush.bf16.msra.mxu0 0
    %98 = vmatpush.bf16.msra.mxu0 0
    %99 = vmatpush.bf16.msra.mxu0 %v86
    %100 = vmatpush.bf16.msra.mxu0 %v85
    %101 = vmatmul.bf16.gmra.mxu0 %v91
    %v102 = vpop.f32.mrf.mxu0
    %v103 = vadd.f32 %v75, %v102
    %v104 = vpop.f32.mrf.mxu0
    %105 = vdwg.mxu0
    %v106 = vmax.f32 %v103, 0.0
    %v107 = vpack.c.bf16 %v106, %v106
    %v108 = vld [vmem:[#allocation7] sm:$0xf]
    %v109 = vld [vmem:[#allocation7 + $0x4] sm:$0xf]
    %v110 = vld [vmem:[#allocation7 + $0x8] sm:$0xf]
    %v111 = vld [vmem:[#allocation7 + $0xc] sm:$0xf]
    %v112 = vld [vmem:[#allocation7 + $0x10] sm:$0xf]
    %v113 = vld [vmem:[#allocation7 + $0x14] sm:$0xf]
    %v114 = vld [vmem:[#allocation7 + $0x18] sm:$0xf]
    %v115 = vld [vmem:[#allocation7 + $0x1c] sm:$0xf]
    %v116 = vld [vmem:[#allocation7 + $0x20] sm:$0xf]
    %v117 = vld [vmem:[#allocation7 + $0x24] sm:$0xf]
    %v118 = vld [vmem:[#allocation7 + $0x28] sm:$0xf]
    %v119 = vld [vmem:[#allocation7 + $0x2c] sm:$0xf]
    %v120 = vld [vmem:[#allocation7 + $0x30] sm:$0xf]
    %v121 = vld [vmem:[#allocation7 + $0x34] sm:$0xf]
    %v122 = vld [vmem:[#allocation7 + $0x38] sm:$0xf]
    %v123 = vld [vmem:[#allocation7 + $0x3c] sm:$0xf]
    %v124 = vld [vmem:[%s4] sm:$0x1]
    %v126 = vperm.slane %v124, 0
    %v144 = vunpack.c.l.b16 %v108
    %v145 = vunpack.c.l.b16 %v109
    %v146 = vunpack.c.l.b16 %v110
    %v147 = vunpack.c.l.b16 %v111
    %v148 = vunpack.c.l.b16 %v112
    %v149 = vunpack.c.l.b16 %v113
    %v150 = vunpack.c.l.b16 %v114
    %v151 = vunpack.c.l.b16 %v115
    %v152 = vunpack.c.l.b16 %v116
    %v153 = vunpack.c.l.b16 %v117
    %v154 = vunpack.c.l.b16 %v118
    %v155 = vunpack.c.l.b16 %v119
    %v156 = vunpack.c.l.b16 %v120
    %v157 = vunpack.c.l.b16 %v121
    %v158 = vunpack.c.l.b16 %v122
    %v159 = vunpack.c.l.b16 %v123
    %v160 = vpack.c.b16 %v145, %v144
    %v161 = vpack.c.b16 %v147, %v146
    %v162 = vpack.c.b16 %v149, %v148
    %v163 = vpack.c.b16 %v151, %v150
    %v164 = vpack.c.b16 %v153, %v152
    %v165 = vpack.c.b16 %v155, %v154
    %v166 = vpack.c.b16 %v157, %v156
    %v167 = vpack.c.b16 %v159, %v158
    %176 = vmatpush.bf16.msra.mxu0 %v167
    %177 = vmatpush.bf16.msra.mxu0 %v166
    %178 = vmatpush.bf16.msra.mxu0 %v165
    %179 = vmatpush.bf16.msra.mxu0 %v164
    %180 = vmatpush.bf16.msra.mxu0 %v163
    %181 = vmatpush.bf16.msra.mxu0 %v162
    %182 = vmatpush.bf16.msra.mxu0 %v161
    %183 = vmatpush.bf16.msra.mxu0 %v160
    %184 = vmatmul.bf16.gmra.mxu0 %v107
    %v185 = vpop.f32.mrf.mxu0
    %v186 = vadd.f32 %v126, %v185
    %v187 = vpop.f32.mrf.mxu0
    %188 = vdwg.mxu0
    %v189 = vxor.u32 %v186, 2147483648
    %v190 = vmul.f32 %v189, 1.442695
    %v191 = vpow.pop %v190
    %v192 = vadd.f32 %v191, 1.0
    %v193 = vrcp.pop %v192
    %v194 = vmul.f32 %v192, %v193
    %v195 = vsub.f32 1.0, %v194
    %v196 = vmul.f32 %v193, %v195
    %v197 = vadd.f32 %v193, %v196
    %vm198 = vweird.f32 %v192
    %vm199 = vweird.f32 %v193
    %vm200 = vmor %vm198, %vm199
    %v201 = vsel %vm200, %v193, %v197
    %v202 = vand.u32 2147483647, %v192
    %vm203 = vcmp.eq.f32.partialorder %v202, 8.507059e+37
    %v204 = vand.u32 %v192, 2147483648
    %v205 = vor.u32 1.1754944e-38, %v204
    %v206 = vsel %vm203, %v205, %v201
    %v207 = vmul.f32 1.0, %v206
    %208 = vst [vmem:[#allocation8] sm:$0xff] %v207
    // Predicated region
    $region34: #{tpu_custom_call.1} parent=1 // pred_check
      _
    $region35: #{tpu_custom_call.1} parent=1 // pred_check_branch
      %210 = sbr.rel (0) target = $region37
    $region36: #{tpu_custom_call.1} parent=1 // pred_region
      %212 = vsyncadd [#allocation4], 0
      %s214 = sshll.u32 [#allocation8], 4
      %s215 = int_to_ptr.vmem [resolvable:$true] %s214
      %s216 = sshll.u32 %s5, 4
      %s217 = int_to_ptr.hbm [resolvable:$true] %s216
      %219 = dma.vmem_to_hbm [thread:$0]  %s215, 128, %s217, [#allocation4]
    $region37: #{tpu_custom_call.1} parent=1 // pred_fallthru
      _
    // Predicated region
    $region38: #{tpu_custom_call.1} parent=1 // pred_check
      _
    $region39: #{tpu_custom_call.1} parent=1 // pred_check_branch
      %221 = sbr.rel (0) target = $region41
    $region40: #{tpu_custom_call.1} parent=1 // pred_region
      %223 = dma.done [#allocation4], 128
    $region41: #{tpu_custom_call.1} parent=1 // pred_fallthru
      _
    %224 = vsyncpa [#allocation3], 1
    %225 = vsyncpa [#allocation6], 1
    %226 = vsyncpa [#allocation4], 1

</llo_original>
